<compile_context>
chip_gen: v7x
topology: tpu7x:2x2x1
jax: 0.10.0
libtpu: 0.0.40
codegen_flags: <defaults>
</compile_context>

<pallas_src>
import jax
import jax.numpy as jnp
from jax.experimental import pallas as pl
from jax.experimental.pallas import tpu as pltpu


def _se_conv1x1_kernel(scale_ref, w_ref, x_ref, o_ref):
    # scale_ref: (1, Cin)        SE gate logits (native dtype)
    # w_ref:     (Cout, Cin)     conv weight (f32)
    # x_ref:     (Cin, T)        activation tile (bf16), fed to MXU as-is
    # o_ref:     (Cout, T)       output tile (bf16)
    #
    # NOTE: the (Cout, Cin) gate-fold is recomputed per HW tile on purpose.
    # Hoisting it into scratch under @pl.when(hw_tile == 0) is unsafe with
    # dimension_semantics=("parallel", "parallel"): on megacore parts the HW
    # axis is sharded across TensorCores, so one core never executes tile 0.
    # The recompute is a 336-wide sigmoid (EUP) + ~19k VPU mults — negligible
    # next to the (Cin x tile_hw) matmul and its DMA.
    s = jax.nn.sigmoid(scale_ref[...].astype(jnp.float32))             # f32, EUP
    w_scaled = (w_ref[...].astype(jnp.float32) * s).astype(x_ref.dtype)  # tiny fold
    o_ref[...] = jnp.dot(
        w_scaled, x_ref[...],                                           # bf16 MXU path
        preferred_element_type=jnp.float32,                             # f32 accumulate
    ).astype(o_ref.dtype)


def _pick_tile_hw(hw):
    if hw <= 256:
        return hw  # single full-extent block (legal even if not 128-aligned)
    # ~2 lane-dense tiles (multiple of 128): both v7x cores get work and
    # single-core chips get DMA/compute/store overlap, with minimal per-step
    # grid overhead for this tiny, HBM-bound problem.
    return 128 * pl.cdiv(pl.cdiv(hw, 2), 128)


def sigmoid_mul_conv1x1(x113, x109, weight, *, tile_hw=None):
    """Equivalent of: conv2d(sigmoid(x113) * x109) with a 1x1 conv, no bias.

    x113:   [N, Cin, 1, 1]   SE gate logits
    x109:   [N, Cin, H, W]   activations (bf16 recommended)
    weight: [Cout, Cin, 1, 1]
    returns [N, Cout, H, W]  (dtype of x109)
    """
    N, Cin, H, W = x109.shape
    Cout = weight.shape[0]
    HW = H * W

    # Layout plumbing only — contiguous reshapes (views), no transposes.
    x_flat = x109.reshape(N, Cin, HW)      # (N, Cin, HW), native NCHW flatten
    scale = x113.reshape(N, 1, Cin)        # per-batch SE gate logits
    w = weight.reshape(Cout, Cin)          # (Cout, Cin)

    if tile_hw is None:
        tile_hw = _pick_tile_hw(HW)
    n_hw = pl.cdiv(HW, tile_hw)

    # Advisory cost hint: helps XLA schedule around this tiny custom call.
    act_bytes = x_flat.dtype.itemsize
    cost = pl.CostEstimate(
        flops=2 * N * Cout * Cin * HW,
        transcendentals=N * Cin,
        bytes_accessed=(x_flat.size * act_bytes
                        + N * Cout * HW * act_bytes
                        + w.size * w.dtype.itemsize
                        + scale.size * scale.dtype.itemsize),
    )

    # VMEM note: double-buffered x tiles are 2*Cin*tile_hw*itemsize (~0.7 MiB
    # here) — safe on all generations. If reused on earlier EfficientNet stages
    # with much larger Cin*HW, keep this HW tiling (never tile Cin, the
    # contraction) and raise vmem_limit_bytes if the slab grows past a few MiB.
    out = pl.pallas_call(
        _se_conv1x1_kernel,
        out_shape=jax.ShapeDtypeStruct((N, Cout, HW), x109.dtype),
        grid_spec=pltpu.PrefetchScalarGridSpec(
            num_scalar_prefetch=0,
            grid=(N, n_hw),
            in_specs=[
                # per-batch SE gate (batch dim squeezed out of the kernel ref)
                pl.BlockSpec((None, 1, Cin), lambda b, t: (b, 0, 0)),
                # weight: resident, same block every step
                pl.BlockSpec((Cout, Cin), lambda b, t: (0, 0)),
                # lane-dense activation tile for this (batch, hw-tile)
                pl.BlockSpec((None, Cin, tile_hw), lambda b, t: (b, 0, t)),
            ],
            out_specs=pl.BlockSpec((None, Cout, tile_hw), lambda b, t: (b, 0, t)),
        ),
        compiler_params=pltpu.CompilerParams(
            # batches and HW tiles are independent (HW is the output dim, not
            # the reduction) -> both axes can shard across v7x TensorCores.
            dimension_semantics=("parallel", "parallel"),
        ),
        cost_estimate=cost,
    )(scale, w, x_flat)

    return out.reshape(N, Cout, H, W)


if __name__ == "__main__":
    key = jax.random.PRNGKey(0)
    k1, k2, k3 = jax.random.split(key, 3)

    # Shapes implied by the PyTorch module.
    N, Cin, Cout, H, W = 1, 336, 56, 28, 28

    # bf16 activations (halve HBM traffic of this memory-bound op); f32 weight.
    x109 = jax.random.normal(k1, (N, Cin, H, W), dtype=jnp.float32).astype(jnp.bfloat16)
    x113 = jax.random.normal(k2, (N, Cin, 1, 1), dtype=jnp.float32).astype(jnp.bfloat16)
    bound = 1.0 / (Cin ** 0.5)  # kaiming-uniform-like bound for a 1x1 conv
    weight = jax.random.uniform(
        k3, (Cout, Cin, 1, 1), dtype=jnp.float32, minval=-bound, maxval=bound
    )

    out = sigmoid_mul_conv1x1(x113, x109, weight)
    out = jax.block_until_ready(out)

    # Reference check (f32) against plain-JAX conv semantics on the same inputs.
    x109_f = x109.astype(jnp.float32)
    x113_f = x113.astype(jnp.float32)
    scaled = jax.nn.sigmoid(x113_f) * x109_f
    ref = jax.lax.conv_general_dilated(
        scaled, weight, window_strides=(1, 1), padding="VALID",
        dimension_numbers=("NCHW", "OIHW", "NCHW"),
    )
    assert out.shape == (N, Cout, H, W)
    assert out.dtype == x109.dtype
    assert jnp.allclose(out.astype(jnp.float32), ref, atol=3e-2, rtol=3e-2), (
        float(jnp.max(jnp.abs(out.astype(jnp.float32) - ref)))
    )

    print("KERNEL_OK")
</pallas_src>

<mosaic_0001>
module attributes {stable_mosaic.version = 11 : i64} {
  func.func @_se_conv1x1_kernel(%arg0: i32, %arg1: i32, %arg2: memref<1x1x336xbf16, #tpu.memory_space<vmem>>, %arg3: memref<56x336xf32, #tpu.memory_space<vmem>>, %arg4: memref<1x336x512xbf16, #tpu.memory_space<vmem>>, %arg5: memref<1x56x512xbf16, #tpu.memory_space<vmem>>) attributes {dimension_semantics = [#tpu.dimension_semantics<parallel>, #tpu.dimension_semantics<parallel>], iteration_bounds = array<i64: 1, 2>, scalar_prefetch = 0 : i64, scratch_operands = 0 : i64, tpu.core_type = #tpu.core_type<tc>, window_params = [{transform_indices = @transform_0, window_bounds = array<i64: 1, 1, 336>}, {pipeline_mode = #tpu.pipeline_mode<synchronous>, transform_indices = @transform_1, window_bounds = array<i64: 56, 336>}, {transform_indices = @transform_2, window_bounds = array<i64: 1, 336, 512>}, {transform_indices = @transform_3, window_bounds = array<i64: 1, 56, 512>}]} {
    %c0 = arith.constant 0 : index
    %c0_0 = arith.constant 0 : index
    %c0_1 = arith.constant 0 : index
    %0 = vector.load %arg2[%c0, %c0_0, %c0_1] : memref<1x1x336xbf16, #tpu.memory_space<vmem>>, vector<1x1x336xbf16>
    %1 = vector.shape_cast %0 : vector<1x1x336xbf16> to vector<1x336xbf16>
    %2 = arith.extf %1 : vector<1x336xbf16> to vector<1x336xf32>
    %3 = arith.negf %2 : vector<1x336xf32>
    %4 = math.exp %3 : vector<1x336xf32>
    %cst = arith.constant 1.000000e+00 : f32
    %5 = vector.broadcast %cst : f32 to vector<1x336xf32>
    %6 = arith.addf %5, %4 : vector<1x336xf32>
    %7 = arith.divf %5, %6 : vector<1x336xf32>
    %c0_2 = arith.constant 0 : index
    %c0_3 = arith.constant 0 : index
    %8 = vector.load %arg3[%c0_2, %c0_3] : memref<56x336xf32, #tpu.memory_space<vmem>>, vector<56x336xf32>
    %9 = vector.broadcast %7 : vector<1x336xf32> to vector<56x336xf32>
    %10 = arith.mulf %8, %9 : vector<56x336xf32>
    %11 = arith.truncf %10 : vector<56x336xf32> to vector<56x336xbf16>
    %c0_4 = arith.constant 0 : index
    %c0_5 = arith.constant 0 : index
    %c0_6 = arith.constant 0 : index
    %12 = vector.load %arg4[%c0_4, %c0_5, %c0_6] : memref<1x336x512xbf16, #tpu.memory_space<vmem>>, vector<1x336x512xbf16>
    %13 = vector.shape_cast %12 : vector<1x336x512xbf16> to vector<336x512xbf16>
    %cst_7 = arith.constant dense<0.000000e+00> : vector<56x512xf32>
    %14 = tpu.matmul %11, %13, %cst_7 {dimension_numbers = #tpu.dot_dimension_numbers<[1], [0], [0], [1], [0, 0, 1, 1], [], []>} : vector<56x336xbf16>, vector<336x512xbf16>, vector<56x512xf32> -> vector<56x512xf32>
    %15 = arith.truncf %14 : vector<56x512xf32> to vector<56x512xbf16>
    %c0_8 = arith.constant 0 : index
    %c0_9 = arith.constant 0 : index
    %c0_10 = arith.constant 0 : index
    %16 = vector.load %arg5[%c0_8, %c0_9, %c0_10] : memref<1x56x512xbf16, #tpu.memory_space<vmem>>, vector<1x56x512xbf16>
    %17 = vector.shape_cast %16 : vector<1x56x512xbf16> to vector<56x512xbf16>
    %18 = vector.shape_cast %15 : vector<56x512xbf16> to vector<1x56x512xbf16>
    tpu.vector_store %arg5[%c0_8, %c0_9, %c0_10], %18 {strides = array<i32>} : memref<1x56x512xbf16, #tpu.memory_space<vmem>>, vector<1x56x512xbf16>,
    return
  }
  func.func @transform_0(%arg0: i32, %arg1: i32) -> (i32, i32, i32) {
    %c0_i32 = arith.constant 0 : i32
    %c0_i32_0 = arith.constant 0 : i32
    %c0_i32_1 = arith.constant 0 : i32
    return %arg0, %c0_i32, %c0_i32_0 : i32, i32, i32
  }
  func.func @transform_1(%arg0: i32, %arg1: i32) -> (i32, i32) {
    %c0_i32 = arith.constant 0 : i32
    %c0_i32_0 = arith.constant 0 : i32
    %c0_i32_1 = arith.constant 0 : i32
    return %c0_i32, %c0_i32_0 : i32, i32
  }
  func.func @transform_2(%arg0: i32, %arg1: i32) -> (i32, i32, i32) {
    %c0_i32 = arith.constant 0 : i32
    %c0_i32_0 = arith.constant 0 : i32
    return %arg0, %c0_i32, %arg1 : i32, i32, i32
  }
  func.func @transform_3(%arg0: i32, %arg1: i32) -> (i32, i32, i32) {
    %c0_i32 = arith.constant 0 : i32
    %c0_i32_0 = arith.constant 0 : i32
    return %arg0, %c0_i32, %arg1 : i32, i32, i32
  }
}

</mosaic_0001>

<llo_original>
// kernel: tpu_custom_call.1
$region0: #{tpu_custom_call.1}
  #allocation0 [shape = 'u32[]', space=smem, size = 0x4, offset = 0x4, fixed_abs, tag = 'smem constant byte address 0x4 - core index']
  #allocation1 [shape = 'u32[144,128]{1,0:T(1,128)}', space=vmem, size = 0x12000, scoped, tag = 'internal scratch']
  %s0 = inlined_call_operand.hbm [shape: bf16[1,1,336], index: 0, kind: input, shape index: {}]
  %s1 = inlined_call_operand.hbm [shape: f32[56,336], index: 1, kind: input, shape index: {}]
  %s2 = inlined_call_operand.hbm [shape: bf16[1,336,784], index: 2, kind: input, shape index: {}]
  %s3 = inlined_call_operand.hbm [shape: bf16[1,56,784], index: 3, kind: output, shape index: {}]
  %s4 = sld [smem:[#allocation0]]
  $region57: #{tpu_custom_call.1} parent=0
    _
  %s6 = ssub.s32 1, %s4
  %s7 = scalar_select 0, %s6, %s4
  $region1: #{tpu_custom_call.1} parent=0
    #allocation2 [shape = 'u8[1536]{0}', space=vmem, size = 0x800, scoped, tag = 'input window, operand 0, single buffered']
    #allocation3 [shape = 's32[2]{0}', space=sflag, size = 0x8, scoped, tag = 'scoped memory for tpu_custom_call.1']
    #allocation4 [shape = 's32[2]{0}', space=sflag, size = 0x8, scoped, tag = 'scoped memory for tpu_custom_call.1']
    #allocation5 [shape = 'u8[86016]{0}', space=vmem, size = 0x15000, scoped, tag = 'input window, operand 1, single buffered']
    #allocation6 [shape = 's32[1]{0}', space=sflag, size = 0x4, scoped, tag = 'scoped memory for tpu_custom_call.1']
    #allocation7 [shape = 'u8[688128]{0}', space=vmem, size = 0xa8000, scoped, tag = 'input window, operand 2']
    #allocation8 [shape = 'u8[114688]{0}', space=vmem, size = 0x1c000, scoped, tag = 'output window, operand 0']
    %8 = vsyncpa [#allocation3], 0
    %9 = vsyncpa [#allocation6], 0
    %10 = vsyncpa [#allocation4], 0
    %s11 = scalar_lea.sflag [#allocation4], 1
    %12 = vsyncpa %s11, 0
    loop: start=0, step=1, limit=4
    $region2: #{tpu_custom_call.1} parent=1 // loop_pre_header
      _
    $region3: #{tpu_custom_call.1} parent=1 // loop_header
      %s14 = sphi 0, %s18
      %p15 = scmp.ge.s32.totalorder %s14, 4
      %s21 = sphi 0, %s33
      %s22 = sphi 0, %s29
      %s23 = sphi 0, %s21
      %s24 = sphi 0, %s22
      %s25 = sphi 0, %s23
      %s26 = sphi 0, %s24
      %s36 = sphi 0, %s38
      %s39 = sphi 0, %s36
      %s40 = sphi 0, %s39
      %s56 = sphi 0, %s40
      %s60 = sphi 0, %s60
      %s62 = sphi 0, %s60
      %s63 = sphi 0, %s62
      %s77 = sphi 0, %s63
      %s85 = sphi 0, %s87
      %s88 = sphi 0, %s85
      %s89 = sphi 0, %s88
      %s105 = sphi 0, %s89
      %s113 = sphi 0, %s115
      %s116 = sphi 0, %s113
      %s117 = sphi 0, %s116
      %s133 = sphi 0, %s117
    $region4: #{tpu_custom_call.1} parent=1 // loop_header_branch
      %17 = sbr.rel (%p15) target = $region8
    $region5: #{tpu_custom_call.1} parent=1 // loop_body
      %s19 = ssub.s32 %s14, 1
      %s20 = ssub.s32 %s14, 2
      %s27 = sadd.s32 1, %s22
      %p28 = scmp.ge.s32.totalorder %s27, 2
      %s29 = scalar_select %p28, 0, %s27
      %s30 = sadd.s32 1, %s21
      %s31 = scalar_select %p28, %s30, %s21
      %p32 = scmp.ge.s32.totalorder %s31, 1
      %s33 = scalar_select %p32, 0, %s31
      %s34 = ssub.s32 %s21, %s33
      %p35 = scmp.eq.s32.totalorder %s34, 0
      %s37 = sadd.s32 %s36, 1
      %s38 = scalar_select %p35, %s36, %s37
      %p41 = pneg %p35
      %p42 = scmp.eq.s32.totalorder %s14, 1
      %p43 = por %p41, %p42
      %p44 = scmp.ne.s32.totalorder %s36, %s39
      %p45 = scmp.eq.s32.totalorder %s14, 0
      %p46 = por %p44, %p45
      %p47 = scmp.ne.s32.totalorder %s36, %s39
      %p48 = scmp.eq.s32.totalorder %s19, 1
      %p49 = por %p47, %p48
      %p50 = scmp.ne.s32.totalorder %s39, %s40
      %p51 = scmp.eq.s32.totalorder %s19, 0
      %p52 = por %p50, %p51
      %p53 = scmp.ne.s32.totalorder %s39, %s40
      %p54 = scmp.eq.s32.totalorder %s20, 1
      %p55 = por %p53, %p54
      %p57 = scmp.ne.s32.totalorder %s40, %s56
      %p58 = scmp.eq.s32.totalorder %s20, 0
      %p59 = por %p57, %p58
      %s61 = sadd.s32 %s60, 1
      %p64 = scmp.eq.s32.totalorder %s14, 1
      %p65 = scmp.ne.s32.totalorder %s60, %s62
      %p66 = scmp.eq.s32.totalorder %s14, 0
      %p67 = por %p65, %p66
      %p68 = scmp.ne.s32.totalorder %s60, %s62
      %p69 = scmp.eq.s32.totalorder %s19, 1
      %p70 = por %p68, %p69
      %p71 = scmp.ne.s32.totalorder %s62, %s63
      %p72 = scmp.eq.s32.totalorder %s19, 0
      %p73 = por %p71, %p72
      %p74 = scmp.ne.s32.totalorder %s62, %s63
      %p75 = scmp.eq.s32.totalorder %s20, 1
      %p76 = por %p74, %p75
      %p78 = scmp.ne.s32.totalorder %s63, %s77
      %p79 = scmp.eq.s32.totalorder %s20, 0
      %p80 = por %p78, %p79
      %s81 = ssub.s32 %s21, %s33
      %s82 = ssub.s32 %s22, %s29
      %s83 = sor.u32 %s81, %s82
      %p84 = scmp.eq.s32.totalorder %s83, 0
      %s86 = sadd.s32 %s85, 1
      %s87 = scalar_select %p84, %s85, %s86
      %p90 = pneg %p84
      %p91 = scmp.eq.s32.totalorder %s14, 1
      %p92 = por %p90, %p91
      %p93 = scmp.ne.s32.totalorder %s85, %s88
      %p94 = scmp.eq.s32.totalorder %s14, 0
      %p95 = por %p93, %p94
      %p96 = scmp.ne.s32.totalorder %s85, %s88
      %p97 = scmp.eq.s32.totalorder %s19, 1
      %p98 = por %p96, %p97
      %p99 = scmp.ne.s32.totalorder %s88, %s89
      %p100 = scmp.eq.s32.totalorder %s19, 0
      %p101 = por %p99, %p100
      %p102 = scmp.ne.s32.totalorder %s88, %s89
      %p103 = scmp.eq.s32.totalorder %s20, 1
      %p104 = por %p102, %p103
      %p106 = scmp.ne.s32.totalorder %s89, %s105
      %p107 = scmp.eq.s32.totalorder %s20, 0
      %p108 = por %p106, %p107
      %s109 = ssub.s32 %s21, %s33
      %s110 = ssub.s32 %s22, %s29
      %s111 = sor.u32 %s109, %s110
      %p112 = scmp.eq.s32.totalorder %s111, 0
      %s114 = sadd.s32 %s113, 1
      %s115 = scalar_select %p112, %s113, %s114
      %p118 = pneg %p112
      %p119 = scmp.eq.s32.totalorder %s14, 1
      %p120 = por %p118, %p119
      %p121 = scmp.ne.s32.totalorder %s113, %s116
      %p122 = scmp.eq.s32.totalorder %s14, 0
      %p123 = por %p121, %p122
      %p124 = scmp.ne.s32.totalorder %s113, %s116
      %p125 = scmp.eq.s32.totalorder %s19, 1
      %p126 = por %p124, %p125
      %p127 = scmp.ne.s32.totalorder %s116, %s117
      %p128 = scmp.eq.s32.totalorder %s19, 0
      %p129 = por %p127, %p128
      %p130 = scmp.ne.s32.totalorder %s116, %s117
      %p131 = scmp.eq.s32.totalorder %s20, 1
      %p132 = por %p130, %p131
      %p134 = scmp.ne.s32.totalorder %s117, %s133
      %p135 = scmp.eq.s32.totalorder %s20, 0
      %p136 = por %p134, %p135
      %p137 = scmp.le.s32.totalorder 1, %s14
      %p138 = scmp.lt.s32.totalorder %s14, 3
      %p139 = pnand %p137, %p138
      %p140 = pneg %p139
      // Predicated region
      $region9: #{tpu_custom_call.1} parent=5 // pred_check
        _
      $region10: #{tpu_custom_call.1} parent=5 // pred_check_branch
        %142 = sbr.rel (%p139) target = $region12
      $region11: #{tpu_custom_call.1} parent=5 // pred_region
        %s143 = ssub.s32 %s14, 1
        // Predicated region
        $region13: #{tpu_custom_call.1} parent=11 // pred_check
          %p144 = pneg %p52
        $region14: #{tpu_custom_call.1} parent=11 // pred_check_branch
          %146 = sbr.rel (%p144) target = $region16
        $region15: #{tpu_custom_call.1} parent=11 // pred_region
          %s148 = ssub.s32 48, 48
          %149 = vsyncadd [#allocation3], %s148
          %s150 = smul.addr %s23, 3
          %s151 = smul.addr %s150, 16
          %s152 = scalar_lea.hbm %s0, %s151
          %s154 = sshll.u32 [#allocation2], 4
          %s155 = int_to_ptr.vmem [resolvable:$true] %s154
          %157 = dma.hbm_to_vmem [thread:$0]  %s152, 48, %s155, [#allocation3]
        $region16: #{tpu_custom_call.1} parent=11 // pred_fallthru
          _
        // Predicated region
        $region17: #{tpu_custom_call.1} parent=11 // pred_check
          %p158 = pneg %p73
        $region18: #{tpu_custom_call.1} parent=11 // pred_check_branch
          %160 = sbr.rel (%p158) target = $region20
        $region19: #{tpu_custom_call.1} parent=11 // pred_region
          %s162 = ssub.s32 2688, 2688
          %163 = vsyncadd [#allocation6], %s162
          %s164 = sshll.u32 [#allocation5], 4
          %s165 = int_to_ptr.vmem [resolvable:$true] %s164
          %170 = dma.hbm_to_vmem [thread:$0]  %s1, 2688, %s165, [#allocation6], 384, 384, 24
        $region20: #{tpu_custom_call.1} parent=11 // pred_fallthru
          _
      $region12: #{tpu_custom_call.1} parent=5 // pred_fallthru
        _
      %p171 = scmp.lt.s32.totalorder %s14, 2
      // Predicated region
      $region21: #{tpu_custom_call.1} parent=5 // pred_check
        %p172 = pneg %p171
      $region22: #{tpu_custom_call.1} parent=5 // pred_check_branch
        %174 = sbr.rel (%p172) target = $region24
      $region23: #{tpu_custom_call.1} parent=5 // pred_region
        // Predicated region
        $region25: #{tpu_custom_call.1} parent=23 // pred_check
          %p175 = pneg %p95
        $region26: #{tpu_custom_call.1} parent=23 // pred_check_branch
          %177 = sbr.rel (%p175) target = $region28
        $region27: #{tpu_custom_call.1} parent=23 // pred_region
          %s178 = sand.u32 %s14, 1
          %s179 = scalar_lea.sflag [#allocation3], %s178
          %s180 = sand.u32 %s85, 1
          %s181 = smul.addr %s180, 672
          %s182 = scalar_lea.vmem [#allocation7], %s181
          %s183 = smul.u32 4, %s22
          %s184 = ssub.s32 7, %s183
          %p185 = scmp.lt.s32.totalorder %s184, 4
          %s186 = scalar_select %p185, %s184, 4
          %s187 = smul.u32 2688, %s186
          %s189 = ssub.s32 10752, %s187
          %190 = vsyncadd %s179, %s189
          %p191 = scmp.ne.s32.totalorder 0, %s187
          %s192 = smul.addr %s21, 294
          %s193 = sadd.s32 %s183, %s192
          %s194 = smul.addr %s193, 64
          %s195 = scalar_lea.hbm %s2, %s194
          %s196 = smul.u32 %s186, 4
          %s197 = smul.u32 %s196, 42
          %s198 = sshll.u32 %s182, 4
          %s199 = int_to_ptr.vmem [resolvable:$true] %s198
          %s200 = sshll.u32 %s197, 4
          %204 = dma.hbm_to_vmem [thread:$0]  (%p191), %s195, %s200, %s199, %s179, 448, 256, %s196
        $region28: #{tpu_custom_call.1} parent=23 // pred_fallthru
          _
      $region24: #{tpu_custom_call.1} parent=5 // pred_fallthru
        _
      %p205 = scmp.le.s32.totalorder 1, %s14
      %p206 = scmp.lt.s32.totalorder %s14, 3
      %p207 = pnand %p205, %p206
      %p208 = pneg %p207
      // Predicated region
      $region29: #{tpu_custom_call.1} parent=5 // pred_check
        _
      $region30: #{tpu_custom_call.1} parent=5 // pred_check_branch
        %210 = sbr.rel (%p207) target = $region32
      $region31: #{tpu_custom_call.1} parent=5 // pred_region
        %s211 = ssub.s32 %s14, 1
        // Predicated region
        $region33: #{tpu_custom_call.1} parent=31 // pred_check
          %p212 = pneg %p52
        $region34: #{tpu_custom_call.1} parent=31 // pred_check_branch
          %214 = sbr.rel (%p212) target = $region36
        $region35: #{tpu_custom_call.1} parent=31 // pred_region
          %215 = dma.done [#allocation3], 48
        $region36: #{tpu_custom_call.1} parent=31 // pred_fallthru
          _
        // Predicated region
        $region37: #{tpu_custom_call.1} parent=31 // pred_check
          %p216 = pneg %p73
        $region38: #{tpu_custom_call.1} parent=31 // pred_check_branch
          %218 = sbr.rel (%p216) target = $region40
        $region39: #{tpu_custom_call.1} parent=31 // pred_region
          %219 = dma.done [#allocation6], 2688
        $region40: #{tpu_custom_call.1} parent=31 // pred_fallthru
          _
        %s220 = sand.u32 %s19, 1
        %s221 = scalar_lea.sflag [#allocation3], %s220
        %s222 = sand.u32 %s88, 1
        %s223 = smul.addr %s222, 672
        %s224 = scalar_lea.vmem [#allocation7], %s223
        // Predicated region
        $region41: #{tpu_custom_call.1} parent=31 // pred_check
          %p225 = pneg %p101
        $region42: #{tpu_custom_call.1} parent=31 // pred_check_branch
          %227 = sbr.rel (%p225) target = $region44
        $region43: #{tpu_custom_call.1} parent=31 // pred_region
          %228 = dma.done %s221, 10752
        $region44: #{tpu_custom_call.1} parent=31 // pred_fallthru
          _
        %p229 = pneg %p52
        %p230 = pneg %p49
        %p231 = pneg %p73
        %p232 = pneg %p70
        %s233 = sand.u32 %s19, 1
        %s234 = scalar_lea.sflag [#allocation3], %s233
        %s235 = sand.u32 %s88, 1
        %s236 = smul.addr %s235, 672
        %s237 = scalar_lea.vmem [#allocation7], %s236
        %p238 = pneg %p101
        %p239 = pneg %p98
        %p240 = pneg %p129
        %p241 = pneg %p126
        %s242 = sand.u32 %s116, 1
        %s243 = scalar_lea.sflag [#allocation4], %s242
        %s244 = sand.u32 %s116, 1
        %s245 = smul.addr %s244, 112
        %s246 = scalar_lea.vmem [#allocation8], %s245
        %s247 = smul.u32 4, %s24
        %s248 = ssub.s32 7, %s247
        %p249 = scmp.lt.s32.totalorder %s248, 4
        %s250 = scalar_select %p249, %s248, 4
        %s251 = smul.u32 2688, %s250
        %s252 = smul.u32 4, %s24
        %s253 = ssub.s32 7, %s252
        %p254 = scmp.lt.s32.totalorder %s253, 4
        %s255 = scalar_select %p254, %s253, 4
        %s256 = smul.u32 448, %s255
        %v258 = vld [vmem:[#allocation2] sm:$0x7]
        %v259 = vunpack.c.l.bf16 %v258
        %v260 = vxor.u32 %v259, 2147483648
        %v261 = vmul.f32 %v260, 1.442695
        %v262 = vpow.pop %v261
        %v263 = vadd.f32 %v262, 1.0
        %v264 = vrcp.pop %v263
        %v265 = vmul.f32 1.0, %v264
        %v266 = vld [vmem:[#allocation5] sm:$0xff]
        %v267 = vld [vmem:[#allocation5 + $0x8] sm:$0xff]
        %v268 = vld [vmem:[#allocation5 + $0x10] sm:$0xff]
        %v269 = vld [vmem:[#allocation5 + $0x18] sm:$0xff]
        %v270 = vld [vmem:[#allocation5 + $0x20] sm:$0xff]
        %v271 = vld [vmem:[#allocation5 + $0x28] sm:$0xff]
        %v272 = vld [vmem:[#allocation5 + $0x30] sm:$0xff]
        %v273 = vld [vmem:[#allocation5 + $0x38] sm:$0xff]
        %v274 = vld [vmem:[#allocation5 + $0x40] sm:$0xff]
        %v275 = vld [vmem:[#allocation5 + $0x48] sm:$0xff]
        %v276 = vld [vmem:[#allocation5 + $0x50] sm:$0xff]
        %v277 = vld [vmem:[#allocation5 + $0x58] sm:$0xff]
        %v278 = vld [vmem:[#allocation5 + $0x60] sm:$0xff]
        %v279 = vld [vmem:[#allocation5 + $0x68] sm:$0xff]
        %v280 = vld [vmem:[#allocation5 + $0x70] sm:$0xff]
        %v281 = vld [vmem:[#allocation5 + $0x78] sm:$0xff]
        %v282 = vld [vmem:[#allocation5 + $0x80] sm:$0xff]
        %v283 = vld [vmem:[#allocation5 + $0x88] sm:$0xff]
        %v284 = vld [vmem:[#allocation5 + $0x90] sm:$0xff]
        %v285 = vld [vmem:[#allocation5 + $0x98] sm:$0xff]
        %v286 = vld [vmem:[#allocation5 + $0xa0] sm:$0xff]
        %v288 = vlaneseq
        %v289 = vshrl.u32 %v288, 7
        %v290 = vsub.s32 0, %v289
        %v291 = vrot.slane %v265, %v290
        %v292 = vlaneseq
        %v293 = vshrl.u32 %v292, 7
        %v294 = vsub.s32 2, %v293
        %v295 = vrot.slane %v265, %v294
        %v296 = vlaneseq
        %v297 = vshrl.u32 %v296, 7
        %v298 = vsub.s32 4, %v297
        %v299 = vrot.slane %v265, %v298
        %v303 = vlaneseq
        %v304 = vshrl.u32 %v303, 7
        %v305 = vsub.s32 0, %v304
        %v306 = vrot.slane %v291, %v305
        %v307 = vlaneseq
        %v308 = vshrl.u32 %v307, 7
        %v309 = vsub.s32 0, %v308
        %v310 = vrot.slane %v295, %v309
        %v311 = vlaneseq
        %v312 = vshrl.u32 %v311, 7
        %v313 = vsub.s32 0, %v312
        %v314 = vrot.slane %v299, %v313
        %v315 = vmul.f32 %v266, %v306
        %v316 = vmul.f32 %v267, %v310
        %v317 = vmul.f32 %v268, %v314
        %v318 = vmul.f32 %v269, %v306
        %v319 = vmul.f32 %v270, %v310
        %v320 = vmul.f32 %v271, %v314
        %v321 = vmul.f32 %v272, %v306
        %v322 = vmul.f32 %v273, %v310
        %v323 = vmul.f32 %v274, %v314
        %v324 = vmul.f32 %v275, %v306
        %v325 = vmul.f32 %v276, %v310
        %v326 = vmul.f32 %v277, %v314
        %v327 = vmul.f32 %v278, %v306
        %v328 = vmul.f32 %v279, %v310
        %v329 = vmul.f32 %v280, %v314
        %v330 = vmul.f32 %v281, %v306
        %v331 = vmul.f32 %v282, %v310
        %v332 = vmul.f32 %v283, %v314
        %v333 = vmul.f32 %v284, %v306
        %v334 = vmul.f32 %v285, %v310
        %v335 = vmul.f32 %v286, %v314
        %v336 = vpack.c.bf16 %v318, %v315
        %v337 = vpack.c.bf16 %v319, %v316
        %v338 = vpack.c.bf16 %v320, %v317
        %v339 = vpack.c.bf16 %v324, %v321
        %v340 = vpack.c.bf16 %v325, %v322
        %v341 = vpack.c.bf16 %v326, %v323
        %v342 = vpack.c.bf16 %v330, %v327
        %v343 = vpack.c.bf16 %v331, %v328
        %v344 = vpack.c.bf16 %v332, %v329
        %v345 = vpack.c.bf16 %v333, %v333
        %v346 = vpack.c.bf16 %v334, %v334
        %v347 = vpack.c.bf16 %v335, %v335
        %v348 = vld [vmem:[%s224] sm:$0xff]
        %v349 = vld [vmem:[%s224 + $0x8] sm:$0xff]
        %v350 = vld [vmem:[%s224 + $0x10] sm:$0xff]
        %v351 = vld [vmem:[%s224 + $0x18] sm:$0xff]
        %v352 = vld [vmem:[%s224 + $0x20] sm:$0xff]
        %v353 = vld [vmem:[%s224 + $0x28] sm:$0xff]
        %v354 = vld [vmem:[%s224 + $0x30] sm:$0xff]
        %v355 = vld [vmem:[%s224 + $0x38] sm:$0xff]
        %v356 = vld [vmem:[%s224 + $0x40] sm:$0xff]
        %v357 = vld [vmem:[%s224 + $0x48] sm:$0xff]
        %v358 = vld [vmem:[%s224 + $0x50] sm:$0xff]
        %v359 = vld [vmem:[%s224 + $0x58] sm:$0xff]
        %v360 = vld [vmem:[%s224 + $0x60] sm:$0xff]
        %v361 = vld [vmem:[%s224 + $0x68] sm:$0xff]
        %v362 = vld [vmem:[%s224 + $0x70] sm:$0xff]
        %v363 = vld [vmem:[%s224 + $0x78] sm:$0xff]
        %v364 = vld [vmem:[%s224 + $0x80] sm:$0xff]
        %v365 = vld [vmem:[%s224 + $0x88] sm:$0xff]
        %v366 = vld [vmem:[%s224 + $0x90] sm:$0xff]
        %v367 = vld [vmem:[%s224 + $0x98] sm:$0xff]
        %v368 = vld [vmem:[%s224 + $0xa0] sm:$0xff]
        %v369 = vld [vmem:[%s224 + $0xa8] sm:$0xff]
        %v370 = vld [vmem:[%s224 + $0xb0] sm:$0xff]
        %v371 = vld [vmem:[%s224 + $0xb8] sm:$0xff]
        %v372 = vld [vmem:[%s224 + $0xc0] sm:$0xff]
        %v373 = vld [vmem:[%s224 + $0xc8] sm:$0xff]
        %v374 = vld [vmem:[%s224 + $0xd0] sm:$0xff]
        %v375 = vld [vmem:[%s224 + $0xd8] sm:$0xff]
        %v376 = vld [vmem:[%s224 + $0xe0] sm:$0xff]
        %v377 = vld [vmem:[%s224 + $0xe8] sm:$0xff]
        %v378 = vld [vmem:[%s224 + $0xf0] sm:$0xff]
        %v379 = vld [vmem:[%s224 + $0xf8] sm:$0xff]
        %v380 = vld [vmem:[%s224 + $0x100] sm:$0xff]
        %v381 = vld [vmem:[%s224 + $0x108] sm:$0xff]
        %v382 = vld [vmem:[%s224 + $0x110] sm:$0xff]
        %v383 = vld [vmem:[%s224 + $0x118] sm:$0xff]
        %v384 = vld [vmem:[%s224 + $0x120] sm:$0xff]
        %v385 = vld [vmem:[%s224 + $0x128] sm:$0xff]
        %v386 = vld [vmem:[%s224 + $0x130] sm:$0xff]
        %v387 = vld [vmem:[%s224 + $0x138] sm:$0xff]
        %v388 = vld [vmem:[%s224 + $0x140] sm:$0xff]
        %v389 = vld [vmem:[%s224 + $0x148] sm:$0xff]
        %v390 = vld [vmem:[%s224 + $0x150] sm:$0xff]
        %v391 = vld [vmem:[%s224 + $0x158] sm:$0xff]
        %v392 = vld [vmem:[%s224 + $0x160] sm:$0xff]
        %v393 = vld [vmem:[%s224 + $0x168] sm:$0xff]
        %v394 = vld [vmem:[%s224 + $0x170] sm:$0xff]
        %v395 = vld [vmem:[%s224 + $0x178] sm:$0xff]
        %v396 = vld [vmem:[%s224 + $0x180] sm:$0xff]
        %v397 = vld [vmem:[%s224 + $0x188] sm:$0xff]
        %v398 = vld [vmem:[%s224 + $0x190] sm:$0xff]
        %v399 = vld [vmem:[%s224 + $0x198] sm:$0xff]
        %v400 = vld [vmem:[%s224 + $0x1a0] sm:$0xff]
        %v401 = vld [vmem:[%s224 + $0x1a8] sm:$0xff]
        %v402 = vld [vmem:[%s224 + $0x1b0] sm:$0xff]
        %v403 = vld [vmem:[%s224 + $0x1b8] sm:$0xff]
        %v404 = vld [vmem:[%s224 + $0x1c0] sm:$0xff]
        %v405 = vld [vmem:[%s224 + $0x1c8] sm:$0xff]
        %v406 = vld [vmem:[%s224 + $0x1d0] sm:$0xff]
        %v407 = vld [vmem:[%s224 + $0x1d8] sm:$0xff]
        %v408 = vld [vmem:[%s224 + $0x1e0] sm:$0xff]
        %v409 = vld [vmem:[%s224 + $0x1e8] sm:$0xff]
        %v410 = vld [vmem:[%s224 + $0x1f0] sm:$0xff]
        %v411 = vld [vmem:[%s224 + $0x1f8] sm:$0xff]
        %v412 = vld [vmem:[%s224 + $0x200] sm:$0xff]
        %v413 = vld [vmem:[%s224 + $0x208] sm:$0xff]
        %v414 = vld [vmem:[%s224 + $0x210] sm:$0xff]
        %v415 = vld [vmem:[%s224 + $0x218] sm:$0xff]
        %v416 = vld [vmem:[%s224 + $0x220] sm:$0xff]
        %v417 = vld [vmem:[%s224 + $0x228] sm:$0xff]
        %v418 = vld [vmem:[%s224 + $0x230] sm:$0xff]
        %v419 = vld [vmem:[%s224 + $0x238] sm:$0xff]
        %v420 = vld [vmem:[%s224 + $0x240] sm:$0xff]
        %v421 = vld [vmem:[%s224 + $0x248] sm:$0xff]
        %v422 = vld [vmem:[%s224 + $0x250] sm:$0xff]
        %v423 = vld [vmem:[%s224 + $0x258] sm:$0xff]
        %v424 = vld [vmem:[%s224 + $0x260] sm:$0xff]
        %v425 = vld [vmem:[%s224 + $0x268] sm:$0xff]
        %v426 = vld [vmem:[%s224 + $0x270] sm:$0xff]
        %v427 = vld [vmem:[%s224 + $0x278] sm:$0xff]
        %v428 = vld [vmem:[%s224 + $0x280] sm:$0xff]
        %v429 = vld [vmem:[%s224 + $0x288] sm:$0xff]
        %v430 = vld [vmem:[%s224 + $0x290] sm:$0xff]
        %v431 = vld [vmem:[%s224 + $0x298] sm:$0xff]
        %v516 = vunpack.c.l.b16 %v348
        %v517 = vunpack.c.h.b16 %v348
        %v518 = vunpack.c.l.b16 %v349
        %v519 = vunpack.c.h.b16 %v349
        %v520 = vunpack.c.l.b16 %v350
        %v521 = vunpack.c.h.b16 %v350
        %v522 = vunpack.c.l.b16 %v351
        %v523 = vunpack.c.h.b16 %v351
        %v524 = vunpack.c.l.b16 %v352
        %v525 = vunpack.c.h.b16 %v352
        %v526 = vunpack.c.l.b16 %v353
        %v527 = vunpack.c.h.b16 %v353
        %v528 = vunpack.c.l.b16 %v354
        %v529 = vunpack.c.h.b16 %v354
        %v530 = vunpack.c.l.b16 %v355
        %v531 = vunpack.c.h.b16 %v355
        %v532 = vunpack.c.l.b16 %v356
        %v533 = vunpack.c.h.b16 %v356
        %v534 = vunpack.c.l.b16 %v357
        %v535 = vunpack.c.h.b16 %v357
        %v536 = vunpack.c.l.b16 %v358
        %v537 = vunpack.c.h.b16 %v358
        %v538 = vunpack.c.l.b16 %v359
        %v539 = vunpack.c.h.b16 %v359
        %v540 = vunpack.c.l.b16 %v360
        %v541 = vunpack.c.h.b16 %v360
        %v542 = vunpack.c.l.b16 %v361
        %v543 = vunpack.c.h.b16 %v361
        %v544 = vunpack.c.l.b16 %v362
        %v545 = vunpack.c.h.b16 %v362
        %v546 = vunpack.c.l.b16 %v363
        %v547 = vunpack.c.h.b16 %v363
        %v548 = vunpack.c.l.b16 %v364
        %v549 = vunpack.c.h.b16 %v364
        %v550 = vunpack.c.l.b16 %v365
        %v551 = vunpack.c.h.b16 %v365
        %v552 = vunpack.c.l.b16 %v366
        %v553 = vunpack.c.h.b16 %v366
        %v554 = vunpack.c.l.b16 %v367
        %v555 = vunpack.c.h.b16 %v367
        %v556 = vunpack.c.l.b16 %v368
        %v557 = vunpack.c.h.b16 %v368
        %v558 = vunpack.c.l.b16 %v369
        %v559 = vunpack.c.h.b16 %v369
        %v560 = vunpack.c.l.b16 %v370
        %v561 = vunpack.c.h.b16 %v370
        %v562 = vunpack.c.l.b16 %v371
        %v563 = vunpack.c.h.b16 %v371
        %v564 = vunpack.c.l.b16 %v372
        %v565 = vunpack.c.h.b16 %v372
        %v566 = vunpack.c.l.b16 %v373
        %v567 = vunpack.c.h.b16 %v373
        %v568 = vunpack.c.l.b16 %v374
        %v569 = vunpack.c.h.b16 %v374
        %v570 = vunpack.c.l.b16 %v375
        %v571 = vunpack.c.h.b16 %v375
        %v572 = vunpack.c.l.b16 %v376
        %v573 = vunpack.c.h.b16 %v376
        %v574 = vunpack.c.l.b16 %v377
        %v575 = vunpack.c.h.b16 %v377
        %v576 = vunpack.c.l.b16 %v378
        %v577 = vunpack.c.h.b16 %v378
        %v578 = vunpack.c.l.b16 %v379
        %v579 = vunpack.c.h.b16 %v379
        %v580 = vunpack.c.l.b16 %v380
        %v581 = vunpack.c.h.b16 %v380
        %v582 = vunpack.c.l.b16 %v381
        %v583 = vunpack.c.h.b16 %v381
        %v584 = vunpack.c.l.b16 %v382
        %v585 = vunpack.c.h.b16 %v382
        %v586 = vunpack.c.l.b16 %v383
        %v587 = vunpack.c.h.b16 %v383
        %v588 = vunpack.c.l.b16 %v384
        %v589 = vunpack.c.h.b16 %v384
        %v590 = vunpack.c.l.b16 %v385
        %v591 = vunpack.c.h.b16 %v385
        %v592 = vunpack.c.l.b16 %v386
        %v593 = vunpack.c.h.b16 %v386
        %v594 = vunpack.c.l.b16 %v387
        %v595 = vunpack.c.h.b16 %v387
        %v596 = vunpack.c.l.b16 %v388
        %v597 = vunpack.c.h.b16 %v388
        %v598 = vunpack.c.l.b16 %v389
        %v599 = vunpack.c.h.b16 %v389
        %v600 = vunpack.c.l.b16 %v390
        %v601 = vunpack.c.h.b16 %v390
        %v602 = vunpack.c.l.b16 %v391
        %v603 = vunpack.c.h.b16 %v391
        %v604 = vunpack.c.l.b16 %v392
        %v605 = vunpack.c.h.b16 %v392
        %v606 = vunpack.c.l.b16 %v393
        %v607 = vunpack.c.h.b16 %v393
        %v608 = vunpack.c.l.b16 %v394
        %v609 = vunpack.c.h.b16 %v394
        %v610 = vunpack.c.l.b16 %v395
        %v611 = vunpack.c.h.b16 %v395
        %v612 = vunpack.c.l.b16 %v396
        %v613 = vunpack.c.h.b16 %v396
        %v614 = vunpack.c.l.b16 %v397
        %v615 = vunpack.c.h.b16 %v397
        %v616 = vunpack.c.l.b16 %v398
        %v617 = vunpack.c.h.b16 %v398
        %v618 = vunpack.c.l.b16 %v399
        %v619 = vunpack.c.h.b16 %v399
        %v620 = vunpack.c.l.b16 %v400
        %v621 = vunpack.c.h.b16 %v400
        %v622 = vunpack.c.l.b16 %v401
        %v623 = vunpack.c.h.b16 %v401
        %v624 = vunpack.c.l.b16 %v402
        %v625 = vunpack.c.h.b16 %v402
        %v626 = vunpack.c.l.b16 %v403
        %v627 = vunpack.c.h.b16 %v403
        %v628 = vunpack.c.l.b16 %v404
        %v629 = vunpack.c.h.b16 %v404
        %v630 = vunpack.c.l.b16 %v405
        %v631 = vunpack.c.h.b16 %v405
        %v632 = vunpack.c.l.b16 %v406
        %v633 = vunpack.c.h.b16 %v406
        %v634 = vunpack.c.l.b16 %v407
        %v635 = vunpack.c.h.b16 %v407
        %v636 = vunpack.c.l.b16 %v408
        %v637 = vunpack.c.h.b16 %v408
        %v638 = vunpack.c.l.b16 %v409
        %v639 = vunpack.c.h.b16 %v409
        %v640 = vunpack.c.l.b16 %v410
        %v641 = vunpack.c.h.b16 %v410
        %v642 = vunpack.c.l.b16 %v411
        %v643 = vunpack.c.h.b16 %v411
        %v644 = vunpack.c.l.b16 %v412
        %v645 = vunpack.c.h.b16 %v412
        %v646 = vunpack.c.l.b16 %v413
        %v647 = vunpack.c.h.b16 %v413
        %v648 = vunpack.c.l.b16 %v414
        %v649 = vunpack.c.h.b16 %v414
        %v650 = vunpack.c.l.b16 %v415
        %v651 = vunpack.c.h.b16 %v415
        %v652 = vunpack.c.l.b16 %v416
        %v653 = vunpack.c.h.b16 %v416
        %v654 = vunpack.c.l.b16 %v417
        %v655 = vunpack.c.h.b16 %v417
        %v656 = vunpack.c.l.b16 %v418
        %v657 = vunpack.c.h.b16 %v418
        %v658 = vunpack.c.l.b16 %v419
        %v659 = vunpack.c.h.b16 %v419
        %v660 = vunpack.c.l.b16 %v420
        %v661 = vunpack.c.h.b16 %v420
        %v662 = vunpack.c.l.b16 %v421
        %v663 = vunpack.c.h.b16 %v421
        %v664 = vunpack.c.l.b16 %v422
        %v665 = vunpack.c.h.b16 %v422
        %v666 = vunpack.c.l.b16 %v423
        %v667 = vunpack.c.h.b16 %v423
        %v668 = vunpack.c.l.b16 %v424
        %v669 = vunpack.c.h.b16 %v424
        %v670 = vunpack.c.l.b16 %v425
        %v671 = vunpack.c.h.b16 %v425
        %v672 = vunpack.c.l.b16 %v426
        %v673 = vunpack.c.h.b16 %v426
        %v674 = vunpack.c.l.b16 %v427
        %v675 = vunpack.c.h.b16 %v427
        %v676 = vunpack.c.l.b16 %v428
        %v677 = vunpack.c.h.b16 %v428
        %v678 = vunpack.c.l.b16 %v429
        %v679 = vunpack.c.h.b16 %v429
        %v680 = vunpack.c.l.b16 %v430
        %v681 = vunpack.c.h.b16 %v430
        %v682 = vunpack.c.l.b16 %v431
        %v683 = vunpack.c.h.b16 %v431
        %v684 = vpack.c.b16 %v520, %v516
        %v685 = vpack.c.b16 %v521, %v517
        %v686 = vpack.c.b16 %v522, %v518
        %v687 = vpack.c.b16 %v523, %v519
        %v688 = vpack.c.b16 %v528, %v524
        %v689 = vpack.c.b16 %v529, %v525
        %v690 = vpack.c.b16 %v530, %v526
        %v691 = vpack.c.b16 %v531, %v527
        %v692 = vpack.c.b16 %v536, %v532
        %v693 = vpack.c.b16 %v537, %v533
        %v694 = vpack.c.b16 %v538, %v534
        %v695 = vpack.c.b16 %v539, %v535
        %v696 = vpack.c.b16 %v544, %v540
        %v697 = vpack.c.b16 %v545, %v541
        %v698 = vpack.c.b16 %v546, %v542
        %v699 = vpack.c.b16 %v547, %v543
        %v700 = vpack.c.b16 %v552, %v548
        %v701 = vpack.c.b16 %v553, %v549
        %v702 = vpack.c.b16 %v554, %v550
        %v703 = vpack.c.b16 %v555, %v551
        %v704 = vpack.c.b16 %v560, %v556
        %v705 = vpack.c.b16 %v561, %v557
        %v706 = vpack.c.b16 %v562, %v558
        %v707 = vpack.c.b16 %v563, %v559
        %v708 = vpack.c.b16 %v568, %v564
        %v709 = vpack.c.b16 %v569, %v565
        %v710 = vpack.c.b16 %v570, %v566
        %v711 = vpack.c.b16 %v571, %v567
        %v712 = vpack.c.b16 %v576, %v572
        %v713 = vpack.c.b16 %v577, %v573
        %v714 = vpack.c.b16 %v578, %v574
        %v715 = vpack.c.b16 %v579, %v575
        %v716 = vpack.c.b16 %v584, %v580
        %v717 = vpack.c.b16 %v585, %v581
        %v718 = vpack.c.b16 %v586, %v582
        %v719 = vpack.c.b16 %v587, %v583
        %v720 = vpack.c.b16 %v592, %v588
        %v721 = vpack.c.b16 %v593, %v589
        %v722 = vpack.c.b16 %v594, %v590
        %v723 = vpack.c.b16 %v595, %v591
        %v724 = vpack.c.b16 %v600, %v596
        %v725 = vpack.c.b16 %v601, %v597
        %v726 = vpack.c.b16 %v602, %v598
        %v727 = vpack.c.b16 %v603, %v599
        %v728 = vpack.c.b16 %v608, %v604
        %v729 = vpack.c.b16 %v609, %v605
        %v730 = vpack.c.b16 %v610, %v606
        %v731 = vpack.c.b16 %v611, %v607
        %v732 = vpack.c.b16 %v616, %v612
        %v733 = vpack.c.b16 %v617, %v613
        %v734 = vpack.c.b16 %v618, %v614
        %v735 = vpack.c.b16 %v619, %v615
        %v736 = vpack.c.b16 %v624, %v620
        %v737 = vpack.c.b16 %v625, %v621
        %v738 = vpack.c.b16 %v626, %v622
        %v739 = vpack.c.b16 %v627, %v623
        %v740 = vpack.c.b16 %v632, %v628
        %v741 = vpack.c.b16 %v633, %v629
        %v742 = vpack.c.b16 %v634, %v630
        %v743 = vpack.c.b16 %v635, %v631
        %v744 = vpack.c.b16 %v640, %v636
        %v745 = vpack.c.b16 %v641, %v637
        %v746 = vpack.c.b16 %v642, %v638
        %v747 = vpack.c.b16 %v643, %v639
        %v748 = vpack.c.b16 %v648, %v644
        %v749 = vpack.c.b16 %v649, %v645
        %v750 = vpack.c.b16 %v650, %v646
        %v751 = vpack.c.b16 %v651, %v647
        %v752 = vpack.c.b16 %v656, %v652
        %v753 = vpack.c.b16 %v657, %v653
        %v754 = vpack.c.b16 %v658, %v654
        %v755 = vpack.c.b16 %v659, %v655
        %v756 = vpack.c.b16 %v664, %v660
        %v757 = vpack.c.b16 %v665, %v661
        %v758 = vpack.c.b16 %v666, %v662
        %v759 = vpack.c.b16 %v667, %v663
        %v760 = vpack.c.b16 %v672, %v668
        %v761 = vpack.c.b16 %v673, %v669
        %v762 = vpack.c.b16 %v674, %v670
        %v763 = vpack.c.b16 %v675, %v671
        %v764 = vpack.c.b16 %v680, %v676
        %v765 = vpack.c.b16 %v681, %v677
        %v766 = vpack.c.b16 %v682, %v678
        %v767 = vpack.c.b16 %v683, %v679
        %vm852 = vcmask 654336
        %v854 = vsel %vm852, %v338, 0
        %v857 = vsel %vm852, %v341, 0
        %v860 = vsel %vm852, %v344, 0
        %v863 = vsel %vm852, %v347, 0
        %865 = vmatprep.subr.bf16.mxu0 %v685
        %866 = vmatpush1.bf16.msra.mxu0 %v684
        %867 = vmatprep.subr.bf16.mxu0 %v689
        %868 = vmatpush1.bf16.msra.mxu0 %v688
        %869 = vmatprep.subr.bf16.mxu0 %v693
        %870 = vmatpush1.bf16.msra.mxu0 %v692
        %871 = vmatprep.subr.bf16.mxu0 %v697
        %872 = vmatpush1.bf16.msra.mxu0 %v696
        %873 = vmatprep.subr.bf16.mxu0 %v701
        %874 = vmatpush1.bf16.msra.mxu0 %v700
        %875 = vmatprep.subr.bf16.mxu0 %v705
        %876 = vmatpush1.bf16.msra.mxu0 %v704
        %877 = vmatprep.subr.bf16.mxu0 %v709
        %878 = vmatpush1.bf16.msra.mxu0 %v708
        %879 = vmatprep.subr.bf16.mxu0 %v713
        %880 = vmatpush1.bf16.msra.mxu0 %v712
        %881 = vmatprep.subr.bf16.mxu0 %v717
        %882 = vmatpush1.bf16.msra.mxu0 %v716
        %883 = vmatprep.subr.bf16.mxu0 %v721
        %884 = vmatpush1.bf16.msra.mxu0 %v720
        %885 = vmatprep.subr.bf16.mxu0 %v725
        %886 = vmatpush1.bf16.msra.mxu0 %v724
        %887 = vmatprep.subr.bf16.mxu0 %v729
        %888 = vmatpush1.bf16.msra.mxu0 %v728
        %889 = vmatprep.subr.bf16.mxu0 %v733
        %890 = vmatpush1.bf16.msra.mxu0 %v732
        %891 = vmatprep.subr.bf16.mxu0 %v737
        %892 = vmatpush1.bf16.msra.mxu0 %v736
        %893 = vmatprep.subr.bf16.mxu0 %v741
        %894 = vmatpush1.bf16.msra.mxu0 %v740
        %895 = vmatprep.subr.bf16.mxu0 %v745
        %896 = vmatpush1.bf16.msra.mxu0 %v744
        %897 = vmatprep.mubr.bf16.mxu0 %v337
        %898 = vmatmul.mubr.bf16.gmra.mrb[0].mxu0 %v336
        %v899 = vpop.f32.mrb[0].mxu0
        %v900 = vadd.f32 0.0, %v899
        %v901 = vpop.f32.mrb[0].mxu0
        %v902 = vadd.f32 0.0, %v901
        %v903 = vpop.f32.mrb[0].mxu0
        %v904 = vadd.f32 0.0, %v903
        %v905 = vpop.f32.mrb[0].mxu0
        %v906 = vadd.f32 0.0, %v905
        %907 = vmatprep.mubr.bf16.mxu0 %v340
        %908 = vmatmul.mubr.bf16.gmra.mrb[0].mxu0 %v339
        %v909 = vpop.f32.mrb[0].mxu0
        %v910 = vadd.f32 0.0, %v909
        %v911 = vpop.f32.mrb[0].mxu0
        %v912 = vadd.f32 0.0, %v911
        %v913 = vpop.f32.mrb[0].mxu0
        %v914 = vadd.f32 0.0, %v913
        %v915 = vpop.f32.mrb[0].mxu0
        %v916 = vadd.f32 0.0, %v915
        %917 = vmatprep.mubr.bf16.mxu0 %v343
        %918 = vmatmul.mubr.bf16.gmra.mrb[0].mxu0 %v342
        %v919 = vpop.f32.mrb[0].mxu0
        %v920 = vadd.f32 0.0, %v919
        %v921 = vpop.f32.mrb[0].mxu0
        %v922 = vadd.f32 0.0, %v921
        %v923 = vpop.f32.mrb[0].mxu0
        %v924 = vadd.f32 0.0, %v923
        %v925 = vpop.f32.mrb[0].mxu0
        %v926 = vadd.f32 0.0, %v925
        %927 = vmatprep.mubr.bf16.mxu0 %v346
        %928 = vmatmul.mubr.bf16.gmra.mrb[0].mxu0 %v345
        %v929 = vpop.f32.mrb[0].mxu0
        %v930 = vadd.f32 0.0, %v929
        %v931 = vpop.f32.mrb[0].mxu0
        %v932 = vadd.f32 0.0, %v931
        %v933 = vpop.f32.mrb[0].mxu0
        %v934 = vpop.f32.mrb[0].mxu0
        %935 = vdwg.mxu0
        %936 = vmatprep.subr.bf16.mxu0 %v749
        %937 = vmatpush1.bf16.msra.mxu0 %v748
        %938 = vmatprep.subr.bf16.mxu0 %v753
        %939 = vmatpush1.bf16.msra.mxu0 %v752
        %940 = vmatprep.subr.bf16.mxu0 %v757
        %941 = vmatpush1.bf16.msra.mxu0 %v756
        %942 = vmatprep.subr.bf16.mxu0 %v761
        %943 = vmatpush1.bf16.msra.mxu0 %v760
        %944 = vmatprep.subr.bf16.mxu0 %v765
        %945 = vmatpush1.bf16.msra.mxu0 %v764
        %946 = vmatprep.subr.bf16.mxu0 0
        %947 = vmatpush1.bf16.msra.mxu0 0
        %948 = vmatprep.subr.bf16.mxu0 0
        %949 = vmatpush1.bf16.msra.mxu0 0
        %950 = vmatprep.subr.bf16.mxu0 0
        %951 = vmatpush1.bf16.msra.mxu0 0
        %952 = vmatprep.subr.bf16.mxu0 0
        %953 = vmatpush1.bf16.msra.mxu0 0
        %954 = vmatprep.subr.bf16.mxu0 0
        %955 = vmatpush1.bf16.msra.mxu0 0
        %956 = vmatprep.subr.bf16.mxu0 0
        %957 = vmatpush1.bf16.msra.mxu0 0
        %958 = vmatprep.subr.bf16.mxu0 0
        %959 = vmatpush1.bf16.msra.mxu0 0
        %960 = vmatprep.subr.bf16.mxu0 0
        %961 = vmatpush1.bf16.msra.mxu0 0
        %962 = vmatprep.subr.bf16.mxu0 0
        %963 = vmatpush1.bf16.msra.mxu0 0
        %964 = vmatprep.subr.bf16.mxu0 0
        %965 = vmatpush1.bf16.msra.mxu0 0
        %966 = vmatprep.subr.bf16.mxu0 0
        %967 = vmatpush1.bf16.msra.mxu0 0
        %968 = vmatprep.mubr.bf16.mxu0 0
        %969 = vmatmul.mubr.bf16.gmra.mrb[0].mxu0 %v854
        %v970 = vpop.f32.mrb[0].mxu0
        %v971 = vadd.f32 %v900, %v970
        %v972 = vpop.f32.mrb[0].mxu0
        %v973 = vadd.f32 %v902, %v972
        %v974 = vpop.f32.mrb[0].mxu0
        %v975 = vadd.f32 %v904, %v974
        %v976 = vpop.f32.mrb[0].mxu0
        %v977 = vadd.f32 %v906, %v976
        %978 = vmatprep.mubr.bf16.mxu0 0
        %979 = vmatmul.mubr.bf16.gmra.mrb[0].mxu0 %v857
        %v980 = vpop.f32.mrb[0].mxu0
        %v981 = vadd.f32 %v910, %v980
        %v982 = vpop.f32.mrb[0].mxu0
        %v983 = vadd.f32 %v912, %v982
        %v984 = vpop.f32.mrb[0].mxu0
        %v985 = vadd.f32 %v914, %v984
        %v986 = vpop.f32.mrb[0].mxu0
        %v987 = vadd.f32 %v916, %v986
        %988 = vmatprep.mubr.bf16.mxu0 0
        %989 = vmatmul.mubr.bf16.gmra.mrb[0].mxu0 %v860
        %v990 = vpop.f32.mrb[0].mxu0
        %v991 = vadd.f32 %v920, %v990
        %v992 = vpop.f32.mrb[0].mxu0
        %v993 = vadd.f32 %v922, %v992
        %v994 = vpop.f32.mrb[0].mxu0
        %v995 = vadd.f32 %v924, %v994
        %v996 = vpop.f32.mrb[0].mxu0
        %v997 = vadd.f32 %v926, %v996
        %998 = vmatprep.mubr.bf16.mxu0 0
        %999 = vmatmul.mubr.bf16.gmra.mrb[0].mxu0 %v863
        %v1000 = vpop.f32.mrb[0].mxu0
        %v1001 = vadd.f32 %v930, %v1000
        %v1002 = vpop.f32.mrb[0].mxu0
        %v1003 = vadd.f32 %v932, %v1002
        %v1004 = vpop.f32.mrb[0].mxu0
        %v1005 = vpop.f32.mrb[0].mxu0
        %1006 = vdwg.mxu0
        %1007 = vmatprep.subr.bf16.mxu0 %v687
        %1008 = vmatpush1.bf16.msra.mxu0 %v686
        %1009 = vmatprep.subr.bf16.mxu0 %v691
        %1010 = vmatpush1.bf16.msra.mxu0 %v690
        %1011 = vmatprep.subr.bf16.mxu0 %v695
        %1012 = vmatpush1.bf16.msra.mxu0 %v694
        %1013 = vmatprep.subr.bf16.mxu0 %v699
        %1014 = vmatpush1.bf16.msra.mxu0 %v698
        %1015 = vmatprep.subr.bf16.mxu0 %v703
        %1016 = vmatpush1.bf16.msra.mxu0 %v702
        %1017 = vmatprep.subr.bf16.mxu0 %v707
        %1018 = vmatpush1.bf16.msra.mxu0 %v706
        %1019 = vmatprep.subr.bf16.mxu0 %v711
        %1020 = vmatpush1.bf16.msra.mxu0 %v710
        %1021 = vmatprep.subr.bf16.mxu0 %v715
        %1022 = vmatpush1.bf16.msra.mxu0 %v714
        %1023 = vmatprep.subr.bf16.mxu0 %v719
        %1024 = vmatpush1.bf16.msra.mxu0 %v718
        %1025 = vmatprep.subr.bf16.mxu0 %v723
        %1026 = vmatpush1.bf16.msra.mxu0 %v722
        %1027 = vmatprep.subr.bf16.mxu0 %v727
        %1028 = vmatpush1.bf16.msra.mxu0 %v726
        %1029 = vmatprep.subr.bf16.mxu0 %v731
        %1030 = vmatpush1.bf16.msra.mxu0 %v730
        %1031 = vmatprep.subr.bf16.mxu0 %v735
        %1032 = vmatpush1.bf16.msra.mxu0 %v734
        %1033 = vmatprep.subr.bf16.mxu0 %v739
        %1034 = vmatpush1.bf16.msra.mxu0 %v738
        %1035 = vmatprep.subr.bf16.mxu0 %v743
        %1036 = vmatpush1.bf16.msra.mxu0 %v742
        %1037 = vmatprep.subr.bf16.mxu0 %v747
        %1038 = vmatpush1.bf16.msra.mxu0 %v746
        %1039 = vmatprep.mubr.bf16.mxu0 %v337
        %1040 = vmatmul.mubr.bf16.gmra.mrb[0].mxu0 %v336
        %v1041 = vpop.f32.mrb[0].mxu0
        %v1042 = vadd.f32 0.0, %v1041
        %v1043 = vpop.f32.mrb[0].mxu0
        %v1044 = vadd.f32 0.0, %v1043
        %v1045 = vpop.f32.mrb[0].mxu0
        %v1046 = vadd.f32 0.0, %v1045
        %v1047 = vpop.f32.mrb[0].mxu0
        %v1048 = vadd.f32 0.0, %v1047
        %1049 = vmatprep.mubr.bf16.mxu0 %v340
        %1050 = vmatmul.mubr.bf16.gmra.mrb[0].mxu0 %v339
        %v1051 = vpop.f32.mrb[0].mxu0
        %v1052 = vadd.f32 0.0, %v1051
        %v1053 = vpop.f32.mrb[0].mxu0
        %v1054 = vadd.f32 0.0, %v1053
        %v1055 = vpop.f32.mrb[0].mxu0
        %v1056 = vadd.f32 0.0, %v1055
        %v1057 = vpop.f32.mrb[0].mxu0
        %v1058 = vadd.f32 0.0, %v1057
        %1059 = vmatprep.mubr.bf16.mxu0 %v343
        %1060 = vmatmul.mubr.bf16.gmra.mrb[0].mxu0 %v342
        %v1061 = vpop.f32.mrb[0].mxu0
        %v1062 = vadd.f32 0.0, %v1061
        %v1063 = vpop.f32.mrb[0].mxu0
        %v1064 = vadd.f32 0.0, %v1063
        %v1065 = vpop.f32.mrb[0].mxu0
        %v1066 = vadd.f32 0.0, %v1065
        %v1067 = vpop.f32.mrb[0].mxu0
        %v1068 = vadd.f32 0.0, %v1067
        %1069 = vmatprep.mubr.bf16.mxu0 %v346
        %1070 = vmatmul.mubr.bf16.gmra.mrb[0].mxu0 %v345
        %v1071 = vpop.f32.mrb[0].mxu0
        %v1072 = vadd.f32 0.0, %v1071
        %v1073 = vpop.f32.mrb[0].mxu0
        %v1074 = vadd.f32 0.0, %v1073
        %v1075 = vpop.f32.mrb[0].mxu0
        %v1076 = vpop.f32.mrb[0].mxu0
        %1077 = vdwg.mxu0
        %1078 = vmatprep.subr.bf16.mxu0 %v751
        %1079 = vmatpush1.bf16.msra.mxu0 %v750
        %1080 = vmatprep.subr.bf16.mxu0 %v755
        %1081 = vmatpush1.bf16.msra.mxu0 %v754
        %1082 = vmatprep.subr.bf16.mxu0 %v759
        %1083 = vmatpush1.bf16.msra.mxu0 %v758
        %1084 = vmatprep.subr.bf16.mxu0 %v763
        %1085 = vmatpush1.bf16.msra.mxu0 %v762
        %1086 = vmatprep.subr.bf16.mxu0 %v767
        %1087 = vmatpush1.bf16.msra.mxu0 %v766
        %1088 = vmatprep.subr.bf16.mxu0 0
        %1089 = vmatpush1.bf16.msra.mxu0 0
        %1090 = vmatprep.subr.bf16.mxu0 0
        %1091 = vmatpush1.bf16.msra.mxu0 0
        %1092 = vmatprep.subr.bf16.mxu0 0
        %1093 = vmatpush1.bf16.msra.mxu0 0
        %1094 = vmatprep.subr.bf16.mxu0 0
        %1095 = vmatpush1.bf16.msra.mxu0 0
        %1096 = vmatprep.subr.bf16.mxu0 0
        %1097 = vmatpush1.bf16.msra.mxu0 0
        %1098 = vmatprep.subr.bf16.mxu0 0
        %1099 = vmatpush1.bf16.msra.mxu0 0
        %1100 = vmatprep.subr.bf16.mxu0 0
        %1101 = vmatpush1.bf16.msra.mxu0 0
        %1102 = vmatprep.subr.bf16.mxu0 0
        %1103 = vmatpush1.bf16.msra.mxu0 0
        %1104 = vmatprep.subr.bf16.mxu0 0
        %1105 = vmatpush1.bf16.msra.mxu0 0
        %1106 = vmatprep.subr.bf16.mxu0 0
        %1107 = vmatpush1.bf16.msra.mxu0 0
        %1108 = vmatprep.subr.bf16.mxu0 0
        %1109 = vmatpush1.bf16.msra.mxu0 0
        %1110 = vmatprep.mubr.bf16.mxu0 0
        %1111 = vmatmul.mubr.bf16.gmra.mrb[0].mxu0 %v854
        %v1112 = vpop.f32.mrb[0].mxu0
        %v1113 = vadd.f32 %v1042, %v1112
        %v1114 = vpop.f32.mrb[0].mxu0
        %v1115 = vadd.f32 %v1044, %v1114
        %v1116 = vpop.f32.mrb[0].mxu0
        %v1117 = vadd.f32 %v1046, %v1116
        %v1118 = vpop.f32.mrb[0].mxu0
        %v1119 = vadd.f32 %v1048, %v1118
        %1120 = vmatprep.mubr.bf16.mxu0 0
        %1121 = vmatmul.mubr.bf16.gmra.mrb[0].mxu0 %v857
        %v1122 = vpop.f32.mrb[0].mxu0
        %v1123 = vadd.f32 %v1052, %v1122
        %v1124 = vpop.f32.mrb[0].mxu0
        %v1125 = vadd.f32 %v1054, %v1124
        %v1126 = vpop.f32.mrb[0].mxu0
        %v1127 = vadd.f32 %v1056, %v1126
        %v1128 = vpop.f32.mrb[0].mxu0
        %v1129 = vadd.f32 %v1058, %v1128
        %1130 = vmatprep.mubr.bf16.mxu0 0
        %1131 = vmatmul.mubr.bf16.gmra.mrb[0].mxu0 %v860
        %v1132 = vpop.f32.mrb[0].mxu0
        %v1133 = vadd.f32 %v1062, %v1132
        %v1134 = vpop.f32.mrb[0].mxu0
        %v1135 = vadd.f32 %v1064, %v1134
        %v1136 = vpop.f32.mrb[0].mxu0
        %v1137 = vadd.f32 %v1066, %v1136
        %v1138 = vpop.f32.mrb[0].mxu0
        %v1139 = vadd.f32 %v1068, %v1138
        %1140 = vmatprep.mubr.bf16.mxu0 0
        %1141 = vmatmul.mubr.bf16.gmra.mrb[0].mxu0 %v863
        %v1142 = vpop.f32.mrb[0].mxu0
        %v1143 = vadd.f32 %v1072, %v1142
        %v1144 = vpop.f32.mrb[0].mxu0
        %v1145 = vadd.f32 %v1074, %v1144
        %v1146 = vpop.f32.mrb[0].mxu0
        %v1147 = vpop.f32.mrb[0].mxu0
        %1148 = vdwg.mxu0
        %v1149 = vpack.c.bf16 %v975, %v971
        %v1150 = vpack.c.bf16 %v977, %v973
        %v1151 = vpack.c.bf16 %v1117, %v1113
        %v1152 = vpack.c.bf16 %v1119, %v1115
        %v1153 = vpack.c.bf16 %v985, %v981
        %v1154 = vpack.c.bf16 %v987, %v983
        %v1155 = vpack.c.bf16 %v1127, %v1123
        %v1156 = vpack.c.bf16 %v1129, %v1125
        %v1157 = vpack.c.bf16 %v995, %v991
        %v1158 = vpack.c.bf16 %v997, %v993
        %v1159 = vpack.c.bf16 %v1137, %v1133
        %v1160 = vpack.c.bf16 %v1139, %v1135
        %v1161 = vpack.c.bf16 %v1001, %v1001
        %v1162 = vpack.c.bf16 %v1003, %v1003
        %v1163 = vpack.c.bf16 %v1143, %v1143
        %v1164 = vpack.c.bf16 %v1145, %v1145
        %v1181 = vunpack.c.l.b16 %v1149
        %v1182 = vunpack.c.l.b16 %v1150
        %v1183 = vunpack.c.l.b16 %v1151
        %v1184 = vunpack.c.l.b16 %v1152
        %v1185 = vunpack.c.h.b16 %v1149
        %v1186 = vunpack.c.h.b16 %v1150
        %v1187 = vunpack.c.h.b16 %v1151
        %v1188 = vunpack.c.h.b16 %v1152
        %v1189 = vunpack.c.l.b16 %v1153
        %v1190 = vunpack.c.l.b16 %v1154
        %v1191 = vunpack.c.l.b16 %v1155
        %v1192 = vunpack.c.l.b16 %v1156
        %v1193 = vunpack.c.h.b16 %v1153
        %v1194 = vunpack.c.h.b16 %v1154
        %v1195 = vunpack.c.h.b16 %v1155
        %v1196 = vunpack.c.h.b16 %v1156
        %v1197 = vunpack.c.l.b16 %v1157
        %v1198 = vunpack.c.l.b16 %v1158
        %v1199 = vunpack.c.l.b16 %v1159
        %v1200 = vunpack.c.l.b16 %v1160
        %v1201 = vunpack.c.h.b16 %v1157
        %v1202 = vunpack.c.h.b16 %v1158
        %v1203 = vunpack.c.h.b16 %v1159
        %v1204 = vunpack.c.h.b16 %v1160
        %v1205 = vunpack.c.l.b16 %v1161
        %v1206 = vunpack.c.l.b16 %v1162
        %v1207 = vunpack.c.l.b16 %v1163
        %v1208 = vunpack.c.l.b16 %v1164
        %v1209 = vpack.c.b16 %v1182, %v1181
        %v1210 = vpack.c.b16 %v1184, %v1183
        %v1211 = vpack.c.b16 %v1186, %v1185
        %v1212 = vpack.c.b16 %v1188, %v1187
        %v1213 = vpack.c.b16 %v1190, %v1189
        %v1214 = vpack.c.b16 %v1192, %v1191
        %v1215 = vpack.c.b16 %v1194, %v1193
        %v1216 = vpack.c.b16 %v1196, %v1195
        %v1217 = vpack.c.b16 %v1198, %v1197
        %v1218 = vpack.c.b16 %v1200, %v1199
        %v1219 = vpack.c.b16 %v1202, %v1201
        %v1220 = vpack.c.b16 %v1204, %v1203
        %v1221 = vpack.c.b16 %v1206, %v1205
        %v1222 = vpack.c.b16 %v1208, %v1207
        %1237 = vst [vmem:[%s246] sm:$0xff] %v1209
        %1238 = vst [vmem:[%s246 + $0x8] sm:$0xff] %v1210
        %1239 = vst [vmem:[%s246 + $0x10] sm:$0xff] %v1211
        %1240 = vst [vmem:[%s246 + $0x18] sm:$0xff] %v1212
        %1241 = vst [vmem:[%s246 + $0x20] sm:$0xff] %v1213
        %1242 = vst [vmem:[%s246 + $0x28] sm:$0xff] %v1214
        %1243 = vst [vmem:[%s246 + $0x30] sm:$0xff] %v1215
        %1244 = vst [vmem:[%s246 + $0x38] sm:$0xff] %v1216
        %1245 = vst [vmem:[%s246 + $0x40] sm:$0xff] %v1217
        %1246 = vst [vmem:[%s246 + $0x48] sm:$0xff] %v1218
        %1247 = vst [vmem:[%s246 + $0x50] sm:$0xff] %v1219
        %1248 = vst [vmem:[%s246 + $0x58] sm:$0xff] %v1220
        %1249 = vst [vmem:[%s246 + $0x60] sm:$0xff] %v1221
        %1250 = vst [vmem:[%s246 + $0x68] sm:$0xff] %v1222
        %s1251 = sand.u32 %s116, 1
        %s1252 = scalar_lea.sflag [#allocation4], %s1251
        %s1253 = sand.u32 %s116, 1
        %s1254 = smul.addr %s1253, 112
        %s1255 = scalar_lea.vmem [#allocation8], %s1254
        // Predicated region
        $region45: #{tpu_custom_call.1} parent=31 // pred_check
          %p1256 = pneg %p126
        $region46: #{tpu_custom_call.1} parent=31 // pred_check_branch
          %1258 = sbr.rel (%p1256) target = $region48
        $region47: #{tpu_custom_call.1} parent=31 // pred_region
          %s1259 = smul.u32 4, %s24
          %s1260 = ssub.s32 7, %s1259
          %p1261 = scmp.lt.s32.totalorder %s1260, 4
          %s1262 = scalar_select %p1261, %s1260, 4
          %s1263 = smul.u32 448, %s1262
          %s1265 = ssub.s32 1792, %s1263
          %1266 = vsyncadd %s1252, %s1265
          %p1267 = scmp.ne.s32.totalorder 0, %s1263
          %s1268 = smul.addr %s23, 49
          %s1269 = sadd.s32 %s1259, %s1268
          %s1270 = smul.addr %s1269, 64
          %s1271 = scalar_lea.hbm %s3, %s1270
          %s1272 = smul.u32 %s1262, 4
          %s1273 = smul.u32 %s1272, 7
          %s1274 = sshll.u32 %s1255, 4
          %s1275 = int_to_ptr.vmem [resolvable:$true] %s1274
          %s1276 = sshll.u32 %s1273, 4
          %1280 = dma.vmem_to_hbm [thread:$0]  (%p1267), %s1275, %s1276, %s1271, %s1252, 256, 448, %s1272
        $region48: #{tpu_custom_call.1} parent=31 // pred_fallthru
          _
      $region32: #{tpu_custom_call.1} parent=5 // pred_fallthru
        _
      %p1281 = scmp.le.s32.totalorder 2, %s14
      // Predicated region
      $region49: #{tpu_custom_call.1} parent=5 // pred_check
        %p1282 = pneg %p1281
      $region50: #{tpu_custom_call.1} parent=5 // pred_check_branch
        %1284 = sbr.rel (%p1282) target = $region52
      $region51: #{tpu_custom_call.1} parent=5 // pred_region
        %s1285 = ssub.s32 %s14, 2
        // Predicated region
        $region53: #{tpu_custom_call.1} parent=51 // pred_check
          %p1286 = pneg %p132
        $region54: #{tpu_custom_call.1} parent=51 // pred_check_branch
          %1288 = sbr.rel (%p1286) target = $region56
        $region55: #{tpu_custom_call.1} parent=51 // pred_region
          %s1289 = sand.u32 %s117, 1
          %s1290 = scalar_lea.sflag [#allocation4], %s1289
          %s1291 = sand.u32 %s117, 1
          %s1292 = smul.addr %s1291, 112
          %s1293 = scalar_lea.vmem [#allocation8], %s1292
          %1294 = dma.done %s1290, 1792
        $region56: #{tpu_custom_call.1} parent=51 // pred_fallthru
          _
      $region52: #{tpu_custom_call.1} parent=5 // pred_fallthru
        _
    $region6: #{tpu_custom_call.1} parent=1 // loop_footer
      %s18 = sadd.s32 1, %s14
    $region7: #{tpu_custom_call.1} parent=1 // loop_footer_branch
      %13 = sbr.rel target = $region3
    $region8: #{tpu_custom_call.1} parent=1 // loop_exit
      _
    %1295 = vsyncpa [#allocation3], 1
    %s1296 = scalar_lea.sflag [#allocation3], 1
    %1297 = vsyncpa %s1296, 1
    %1298 = vsyncpa [#allocation6], 1
    %1299 = vsyncpa [#allocation4], 1
    %s1300 = scalar_lea.sflag [#allocation4], 1
    %1301 = vsyncpa %s1300, 1

</llo_original>
